<compile_context>
chip_gen: v6e
topology: v6e:2x2x1
jax: 0.10.0
libtpu: 0.0.40
codegen_flags: <defaults>
</compile_context>

<pallas_src>
import jax
import jax.numpy as jnp
from jax.experimental import pallas as pl
from jax.experimental.pallas import tpu as pltpu

# ---- fixed (requires_grad=False) parameters from LAB2RGB.__init__ ----------
_XYZ_TO_RGB = (
    (3.2404542, -0.969266, 0.0556434),
    (-1.5371385, 1.8760108, -0.2040259),
    (-0.4985314, 0.041556, 1.0572252),
)
_XYZ_TO_RGB_MULT = (0.950456, 1.0, 1.088754)
_EPS = 6.0 / 29.0

# xyz_to_rgb_mult folded into the mix matrix (out_k = sum_c xyz_c * M[c][k]).
_XYZ_TO_RGB_SCALED = tuple(
    tuple(_XYZ_TO_RGB_MULT[c] * _XYZ_TO_RGB[c][k] for k in range(3))
    for c in range(3)
)

_LANES = 512          # lane-axis width of a tile (multiple of 128)
_MAX_TR = 256         # max sublane rows per tile -> <=1.5 MiB per in-tile


def _lab2rgb_kernel(img_ref, out_ref):
    """img_ref/out_ref: (1, 3, TR, LANES) float32 VMEM tiles."""
    # Dense (TR, LANES) per-channel slabs (full 8x128 vreg occupancy).
    L = img_ref[0, 0] * 100.0
    a = (img_ref[0, 1] * 2.0 - 1.0) * 110.0
    b = (img_ref[0, 2] * 2.0 - 1.0) * 110.0

    # einsum('bcyx,bykc->bkyx', img + offset, lab_to_fxfyfz): offset adds 16
    # to L only; matrix mix -> (fx, fy, fz).
    fy = (L + 16.0) * (1.0 / 116.0)
    fx = fy + a * (1.0 / 500.0)
    fz = fy - b * (1.0 / 200.0)

    # inverse f: 3*eps^2*(f - 4/29) for f<=eps, clamp(f,1e-4)^3 for f>eps.
    # Cube via plain multiplies (VPU) instead of `** 3.0` (EUP exp/log).
    def f_inv(f):
        lin = (3.0 * _EPS * _EPS) * (f - 4.0 / 29.0)
        fc = jnp.maximum(f, 1e-4)
        cub = fc * fc * fc
        return jnp.where(f <= _EPS, lin, cub)

    X = f_inv(fx)
    Y = f_inv(fy)
    Z = f_inv(fz)

    # einsum('bcyx,bykc->bkyx', xyz, xyz_to_rgb), with xyz_to_rgb_mult
    # pre-folded into the coefficients: out_k = sum_c xyz_c * M[c][k].
    M = _XYZ_TO_RGB_SCALED
    r = X * M[0][0] + Y * M[1][0] + Z * M[2][0]
    g = X * M[0][1] + Y * M[1][1] + Z * M[2][1]
    bb = X * M[0][2] + Y * M[1][2] + Z * M[2][2]

    # sRGB gamma: c*12.92 for c<=0.0031308, else 1.055*clamp(c,1e-4)^(1/2.4)-0.055
    def gamma(c):
        lin = c * 12.92
        pw = jnp.maximum(c, 1e-4) ** (1.0 / 2.4) * 1.055 - 0.055
        return jnp.where(c <= 0.0031308, lin, pw)

    # Per-channel lane-dense stores (no jnp.stack / sublane relayout).
    out_ref[0, 0] = gamma(r)
    out_ref[0, 1] = gamma(g)
    out_ref[0, 2] = gamma(bb)


def lab2rgb(img):
    """img: (B, 3, H, W) float32 NCHW -> (B, 3, H, W) float32 NCHW."""
    B, C, H, W = img.shape
    assert C == 3, "LAB2RGB expects 3 input channels"
    hw = H * W

    # Retile pixels into dense (rows, LANES) slabs, padded to whole tiles.
    rows_needed = -(-hw // _LANES)                       # ceil(hw / LANES)
    TR = min(_MAX_TR, ((rows_needed + 7) // 8) * 8)      # multiple of 8
    rows_pad = -(-rows_needed // TR) * TR                # whole number of tiles
    hw_pad = rows_pad * _LANES

    x = img.reshape(B, 3, hw).astype(jnp.float32)
    if hw_pad != hw:
        x = jnp.pad(x, ((0, 0), (0, 0), (0, hw_pad - hw)))
    x = x.reshape(B, 3, rows_pad, _LANES)

    grid = (B, rows_pad // TR)
    out = pl.pallas_call(
        _lab2rgb_kernel,
        out_shape=jax.ShapeDtypeStruct((B, 3, rows_pad, _LANES), jnp.float32),
        grid_spec=pltpu.PrefetchScalarGridSpec(
            num_scalar_prefetch=0,
            grid=grid,
            in_specs=[pl.BlockSpec((1, 3, TR, _LANES), lambda b, r: (b, 0, r, 0))],
            out_specs=pl.BlockSpec((1, 3, TR, _LANES), lambda b, r: (b, 0, r, 0)),
        ),
        compiler_params=pltpu.CompilerParams(
            dimension_semantics=("parallel", "parallel"),
            vmem_limit_bytes=32 * 1024 * 1024,
        ),
    )(x)

    out = out.reshape(B, 3, hw_pad)[:, :, :hw]
    return out.reshape(B, 3, H, W)


# ---- pure-JAX reference (mirrors the PyTorch forward) for a sanity check ---
def _lab2rgb_ref(img):
    L = img[:, 0] * 100.0
    a = (img[:, 1] * 2.0 - 1.0) * 110.0
    b = (img[:, 2] * 2.0 - 1.0) * 110.0
    fy = (L + 16.0) / 116.0
    fx = fy + a / 500.0
    fz = fy - b / 200.0

    def f_inv(f):
        return jnp.where(f <= _EPS,
                         3.0 * _EPS * _EPS * (f - 4.0 / 29.0),
                         jnp.maximum(f, 1e-4) ** 3.0)

    X = f_inv(fx) * _XYZ_TO_RGB_MULT[0]
    Y = f_inv(fy) * _XYZ_TO_RGB_MULT[1]
    Z = f_inv(fz) * _XYZ_TO_RGB_MULT[2]
    M = jnp.asarray(_XYZ_TO_RGB, dtype=jnp.float32)
    xyz = jnp.stack([X, Y, Z], axis=1)                   # (B,3,H,W)
    rgb = jnp.einsum('bcyx,ck->bkyx', xyz, M)

    def gamma(c):
        return jnp.where(c <= 0.0031308,
                         c * 12.92,
                         jnp.maximum(c, 1e-4) ** (1.0 / 2.4) * 1.055 - 0.055)

    return gamma(rgb)


if __name__ == "__main__":
    key = jax.random.PRNGKey(0)
    img = jax.random.uniform(key, (2, 3, 16, 16), dtype=jnp.float32)  # LAB in [0,1]

    out = lab2rgb(img)
    out = jax.block_until_ready(out)

    ref = _lab2rgb_ref(img)
    assert out.shape == (2, 3, 16, 16) and out.dtype == jnp.float32
    assert jnp.allclose(out, ref, atol=1e-4, rtol=1e-4)

    print("KERNEL_OK")
</pallas_src>

<mosaic_0001>
module attributes {stable_mosaic.version = 11 : i64} {
  func.func @_lab2rgb_kernel(%arg0: i32, %arg1: i32, %arg2: memref<1x3x8x512xf32, #tpu.memory_space<vmem>>, %arg3: memref<1x3x8x512xf32, #tpu.memory_space<vmem>>) attributes {dimension_semantics = [#tpu.dimension_semantics<parallel>, #tpu.dimension_semantics<parallel>], iteration_bounds = array<i64: 2, 1>, scalar_prefetch = 0 : i64, scratch_operands = 0 : i64, tpu.core_type = #tpu.core_type<tc>, window_params = [{transform_indices = @transform_0, window_bounds = array<i64: 1, 3, 8, 512>}, {transform_indices = @transform_1, window_bounds = array<i64: 1, 3, 8, 512>}]} {
    %c0 = arith.constant 0 : index
    %c0_0 = arith.constant 0 : index
    %c0_1 = arith.constant 0 : index
    %c0_2 = arith.constant 0 : index
    %0 = vector.load %arg2[%c0, %c0_0, %c0_1, %c0_2] : memref<1x3x8x512xf32, #tpu.memory_space<vmem>>, vector<1x1x8x512xf32>
    %1 = vector.shape_cast %0 : vector<1x1x8x512xf32> to vector<8x512xf32>
    %cst = arith.constant 1.000000e+02 : f32
    %2 = vector.broadcast %cst : f32 to vector<8x512xf32>
    %3 = arith.mulf %1, %2 : vector<8x512xf32>
    %c0_3 = arith.constant 0 : index
    %c1 = arith.constant 1 : index
    %c0_4 = arith.constant 0 : index
    %c0_5 = arith.constant 0 : index
    %4 = vector.load %arg2[%c0_3, %c1, %c0_4, %c0_5] : memref<1x3x8x512xf32, #tpu.memory_space<vmem>>, vector<1x1x8x512xf32>
    %5 = vector.shape_cast %4 : vector<1x1x8x512xf32> to vector<8x512xf32>
    %cst_6 = arith.constant 2.000000e+00 : f32
    %6 = vector.broadcast %cst_6 : f32 to vector<8x512xf32>
    %7 = arith.mulf %5, %6 : vector<8x512xf32>
    %cst_7 = arith.constant 1.000000e+00 : f32
    %8 = vector.broadcast %cst_7 : f32 to vector<8x512xf32>
    %9 = arith.subf %7, %8 : vector<8x512xf32>
    %cst_8 = arith.constant 1.100000e+02 : f32
    %10 = vector.broadcast %cst_8 : f32 to vector<8x512xf32>
    %11 = arith.mulf %9, %10 : vector<8x512xf32>
    %c0_9 = arith.constant 0 : index
    %c2 = arith.constant 2 : index
    %c0_10 = arith.constant 0 : index
    %c0_11 = arith.constant 0 : index
    %12 = vector.load %arg2[%c0_9, %c2, %c0_10, %c0_11] : memref<1x3x8x512xf32, #tpu.memory_space<vmem>>, vector<1x1x8x512xf32>
    %13 = vector.shape_cast %12 : vector<1x1x8x512xf32> to vector<8x512xf32>
    %cst_12 = arith.constant 2.000000e+00 : f32
    %14 = vector.broadcast %cst_12 : f32 to vector<8x512xf32>
    %15 = arith.mulf %13, %14 : vector<8x512xf32>
    %cst_13 = arith.constant 1.000000e+00 : f32
    %16 = vector.broadcast %cst_13 : f32 to vector<8x512xf32>
    %17 = arith.subf %15, %16 : vector<8x512xf32>
    %cst_14 = arith.constant 1.100000e+02 : f32
    %18 = vector.broadcast %cst_14 : f32 to vector<8x512xf32>
    %19 = arith.mulf %17, %18 : vector<8x512xf32>
    %cst_15 = arith.constant 1.600000e+01 : f32
    %20 = vector.broadcast %cst_15 : f32 to vector<8x512xf32>
    %21 = arith.addf %3, %20 : vector<8x512xf32>
    %cst_16 = arith.constant 8.620690e-03 : f32
    %22 = vector.broadcast %cst_16 : f32 to vector<8x512xf32>
    %23 = arith.mulf %21, %22 : vector<8x512xf32>
    %cst_17 = arith.constant 2.000000e-03 : f32
    %24 = vector.broadcast %cst_17 : f32 to vector<8x512xf32>
    %25 = arith.mulf %11, %24 : vector<8x512xf32>
    %26 = arith.addf %23, %25 : vector<8x512xf32>
    %cst_18 = arith.constant 5.000000e-03 : f32
    %27 = vector.broadcast %cst_18 : f32 to vector<8x512xf32>
    %28 = arith.mulf %19, %27 : vector<8x512xf32>
    %29 = arith.subf %23, %28 : vector<8x512xf32>
    %cst_19 = arith.constant 0.137931034 : f32
    %30 = vector.broadcast %cst_19 : f32 to vector<8x512xf32>
    %31 = arith.subf %26, %30 : vector<8x512xf32>
    %cst_20 = arith.constant 0.12841855 : f32
    %32 = vector.broadcast %cst_20 : f32 to vector<8x512xf32>
    %33 = arith.mulf %32, %31 : vector<8x512xf32>
    %cst_21 = arith.constant 9.99999974E-5 : f32
    %34 = vector.broadcast %cst_21 : f32 to vector<8x512xf32>
    %35 = arith.maximumf %26, %34 : vector<8x512xf32>
    %36 = arith.mulf %35, %35 : vector<8x512xf32>
    %37 = arith.mulf %36, %35 : vector<8x512xf32>
    %cst_22 = arith.constant 0.206896558 : f32
    %38 = vector.broadcast %cst_22 : f32 to vector<8x512xf32>
    %39 = arith.cmpf ole, %26, %38 : vector<8x512xf32>
    %40 = arith.select %39, %33, %37 : vector<8x512xi1>, vector<8x512xf32>
    %cst_23 = arith.constant 0.137931034 : f32
    %41 = vector.broadcast %cst_23 : f32 to vector<8x512xf32>
    %42 = arith.subf %23, %41 : vector<8x512xf32>
    %cst_24 = arith.constant 0.12841855 : f32
    %43 = vector.broadcast %cst_24 : f32 to vector<8x512xf32>
    %44 = arith.mulf %43, %42 : vector<8x512xf32>
    %cst_25 = arith.constant 9.99999974E-5 : f32
    %45 = vector.broadcast %cst_25 : f32 to vector<8x512xf32>
    %46 = arith.maximumf %23, %45 : vector<8x512xf32>
    %47 = arith.mulf %46, %46 : vector<8x512xf32>
    %48 = arith.mulf %47, %46 : vector<8x512xf32>
    %cst_26 = arith.constant 0.206896558 : f32
    %49 = vector.broadcast %cst_26 : f32 to vector<8x512xf32>
    %50 = arith.cmpf ole, %23, %49 : vector<8x512xf32>
    %51 = arith.select %50, %44, %48 : vector<8x512xi1>, vector<8x512xf32>
    %cst_27 = arith.constant 0.137931034 : f32
    %52 = vector.broadcast %cst_27 : f32 to vector<8x512xf32>
    %53 = arith.subf %29, %52 : vector<8x512xf32>
    %cst_28 = arith.constant 0.12841855 : f32
    %54 = vector.broadcast %cst_28 : f32 to vector<8x512xf32>
    %55 = arith.mulf %54, %53 : vector<8x512xf32>
    %cst_29 = arith.constant 9.99999974E-5 : f32
    %56 = vector.broadcast %cst_29 : f32 to vector<8x512xf32>
    %57 = arith.maximumf %29, %56 : vector<8x512xf32>
    %58 = arith.mulf %57, %57 : vector<8x512xf32>
    %59 = arith.mulf %58, %57 : vector<8x512xf32>
    %cst_30 = arith.constant 0.206896558 : f32
    %60 = vector.broadcast %cst_30 : f32 to vector<8x512xf32>
    %61 = arith.cmpf ole, %29, %60 : vector<8x512xf32>
    %62 = arith.select %61, %55, %59 : vector<8x512xi1>, vector<8x512xf32>
    %cst_31 = arith.constant 3.07990909 : f32
    %63 = vector.broadcast %cst_31 : f32 to vector<8x512xf32>
    %64 = arith.mulf %40, %63 : vector<8x512xf32>
    %cst_32 = arith.constant -1.53713846 : f32
    %65 = vector.broadcast %cst_32 : f32 to vector<8x512xf32>
    %66 = arith.mulf %51, %65 : vector<8x512xf32>
    %67 = arith.addf %64, %66 : vector<8x512xf32>
    %cst_33 = arith.constant -0.542778075 : f32
    %68 = vector.broadcast %cst_33 : f32 to vector<8x512xf32>
    %69 = arith.mulf %62, %68 : vector<8x512xf32>
    %70 = arith.addf %67, %69 : vector<8x512xf32>
    %cst_34 = arith.constant -0.92124468 : f32
    %71 = vector.broadcast %cst_34 : f32 to vector<8x512xf32>
    %72 = arith.mulf %40, %71 : vector<8x512xf32>
    %cst_35 = arith.constant 1.87601078 : f32
    %73 = vector.broadcast %cst_35 : f32 to vector<8x512xf32>
    %74 = arith.mulf %51, %73 : vector<8x512xf32>
    %75 = arith.addf %72, %74 : vector<8x512xf32>
    %cst_36 = arith.constant 0.0452442616 : f32
    %76 = vector.broadcast %cst_36 : f32 to vector<8x512xf32>
    %77 = arith.mulf %62, %76 : vector<8x512xf32>
    %78 = arith.addf %75, %77 : vector<8x512xf32>
    %cst_37 = arith.constant 5.288660e-02 : f32
    %79 = vector.broadcast %cst_37 : f32 to vector<8x512xf32>
    %80 = arith.mulf %40, %79 : vector<8x512xf32>
    %cst_38 = arith.constant -0.204025894 : f32
    %81 = vector.broadcast %cst_38 : f32 to vector<8x512xf32>
    %82 = arith.mulf %51, %81 : vector<8x512xf32>
    %83 = arith.addf %80, %82 : vector<8x512xf32>
    %cst_39 = arith.constant 1.1510582 : f32
    %84 = vector.broadcast %cst_39 : f32 to vector<8x512xf32>
    %85 = arith.mulf %62, %84 : vector<8x512xf32>
    %86 = arith.addf %83, %85 : vector<8x512xf32>
    %cst_40 = arith.constant 1.292000e+01 : f32
    %87 = vector.broadcast %cst_40 : f32 to vector<8x512xf32>
    %88 = arith.mulf %70, %87 : vector<8x512xf32>
    %cst_41 = arith.constant 9.99999974E-5 : f32
    %89 = vector.broadcast %cst_41 : f32 to vector<8x512xf32>
    %90 = arith.maximumf %70, %89 : vector<8x512xf32>
    %cst_42 = arith.constant 0.416666657 : f32
    %91 = vector.broadcast %cst_42 : f32 to vector<8x512xf32>
    %92 = math.powf %90, %91 : vector<8x512xf32>
    %cst_43 = arith.constant 1.055000e+00 : f32
    %93 = vector.broadcast %cst_43 : f32 to vector<8x512xf32>
    %94 = arith.mulf %92, %93 : vector<8x512xf32>
    %cst_44 = arith.constant 5.500000e-02 : f32
    %95 = vector.broadcast %cst_44 : f32 to vector<8x512xf32>
    %96 = arith.subf %94, %95 : vector<8x512xf32>
    %cst_45 = arith.constant 3.130800e-03 : f32
    %97 = vector.broadcast %cst_45 : f32 to vector<8x512xf32>
    %98 = arith.cmpf ole, %70, %97 : vector<8x512xf32>
    %99 = arith.select %98, %88, %96 : vector<8x512xi1>, vector<8x512xf32>
    %c0_46 = arith.constant 0 : index
    %c0_47 = arith.constant 0 : index
    %c0_48 = arith.constant 0 : index
    %c0_49 = arith.constant 0 : index
    %100 = vector.load %arg3[%c0_46, %c0_47, %c0_48, %c0_49] : memref<1x3x8x512xf32, #tpu.memory_space<vmem>>, vector<1x1x8x512xf32>
    %101 = vector.shape_cast %100 : vector<1x1x8x512xf32> to vector<8x512xf32>
    %102 = vector.shape_cast %99 : vector<8x512xf32> to vector<1x1x8x512xf32>
    tpu.vector_store %arg3[%c0_46, %c0_47, %c0_48, %c0_49], %102 {strides = array<i32>} : memref<1x3x8x512xf32, #tpu.memory_space<vmem>>, vector<1x1x8x512xf32>,
    %cst_50 = arith.constant 1.292000e+01 : f32
    %103 = vector.broadcast %cst_50 : f32 to vector<8x512xf32>
    %104 = arith.mulf %78, %103 : vector<8x512xf32>
    %cst_51 = arith.constant 9.99999974E-5 : f32
    %105 = vector.broadcast %cst_51 : f32 to vector<8x512xf32>
    %106 = arith.maximumf %78, %105 : vector<8x512xf32>
    %cst_52 = arith.constant 0.416666657 : f32
    %107 = vector.broadcast %cst_52 : f32 to vector<8x512xf32>
    %108 = math.powf %106, %107 : vector<8x512xf32>
    %cst_53 = arith.constant 1.055000e+00 : f32
    %109 = vector.broadcast %cst_53 : f32 to vector<8x512xf32>
    %110 = arith.mulf %108, %109 : vector<8x512xf32>
    %cst_54 = arith.constant 5.500000e-02 : f32
    %111 = vector.broadcast %cst_54 : f32 to vector<8x512xf32>
    %112 = arith.subf %110, %111 : vector<8x512xf32>
    %cst_55 = arith.constant 3.130800e-03 : f32
    %113 = vector.broadcast %cst_55 : f32 to vector<8x512xf32>
    %114 = arith.cmpf ole, %78, %113 : vector<8x512xf32>
    %115 = arith.select %114, %104, %112 : vector<8x512xi1>, vector<8x512xf32>
    %c0_56 = arith.constant 0 : index
    %c1_57 = arith.constant 1 : index
    %c0_58 = arith.constant 0 : index
    %c0_59 = arith.constant 0 : index
    %116 = vector.load %arg3[%c0_56, %c1_57, %c0_58, %c0_59] : memref<1x3x8x512xf32, #tpu.memory_space<vmem>>, vector<1x1x8x512xf32>
    %117 = vector.shape_cast %116 : vector<1x1x8x512xf32> to vector<8x512xf32>
    %118 = vector.shape_cast %115 : vector<8x512xf32> to vector<1x1x8x512xf32>
    tpu.vector_store %arg3[%c0_56, %c1_57, %c0_58, %c0_59], %118 {strides = array<i32>} : memref<1x3x8x512xf32, #tpu.memory_space<vmem>>, vector<1x1x8x512xf32>,
    %cst_60 = arith.constant 1.292000e+01 : f32
    %119 = vector.broadcast %cst_60 : f32 to vector<8x512xf32>
    %120 = arith.mulf %86, %119 : vector<8x512xf32>
    %cst_61 = arith.constant 9.99999974E-5 : f32
    %121 = vector.broadcast %cst_61 : f32 to vector<8x512xf32>
    %122 = arith.maximumf %86, %121 : vector<8x512xf32>
    %cst_62 = arith.constant 0.416666657 : f32
    %123 = vector.broadcast %cst_62 : f32 to vector<8x512xf32>
    %124 = math.powf %122, %123 : vector<8x512xf32>
    %cst_63 = arith.constant 1.055000e+00 : f32
    %125 = vector.broadcast %cst_63 : f32 to vector<8x512xf32>
    %126 = arith.mulf %124, %125 : vector<8x512xf32>
    %cst_64 = arith.constant 5.500000e-02 : f32
    %127 = vector.broadcast %cst_64 : f32 to vector<8x512xf32>
    %128 = arith.subf %126, %127 : vector<8x512xf32>
    %cst_65 = arith.constant 3.130800e-03 : f32
    %129 = vector.broadcast %cst_65 : f32 to vector<8x512xf32>
    %130 = arith.cmpf ole, %86, %129 : vector<8x512xf32>
    %131 = arith.select %130, %120, %128 : vector<8x512xi1>, vector<8x512xf32>
    %c0_66 = arith.constant 0 : index
    %c2_67 = arith.constant 2 : index
    %c0_68 = arith.constant 0 : index
    %c0_69 = arith.constant 0 : index
    %132 = vector.load %arg3[%c0_66, %c2_67, %c0_68, %c0_69] : memref<1x3x8x512xf32, #tpu.memory_space<vmem>>, vector<1x1x8x512xf32>
    %133 = vector.shape_cast %132 : vector<1x1x8x512xf32> to vector<8x512xf32>
    %134 = vector.shape_cast %131 : vector<8x512xf32> to vector<1x1x8x512xf32>
    tpu.vector_store %arg3[%c0_66, %c2_67, %c0_68, %c0_69], %134 {strides = array<i32>} : memref<1x3x8x512xf32, #tpu.memory_space<vmem>>, vector<1x1x8x512xf32>,
    return
  }
  func.func @transform_0(%arg0: i32, %arg1: i32) -> (i32, i32, i32, i32) {
    %c0_i32 = arith.constant 0 : i32
    %c0_i32_0 = arith.constant 0 : i32
    %c0_i32_1 = arith.constant 0 : i32
    return %arg0, %c0_i32, %arg1, %c0_i32_0 : i32, i32, i32, i32
  }
  func.func @transform_1(%arg0: i32, %arg1: i32) -> (i32, i32, i32, i32) {
    %c0_i32 = arith.constant 0 : i32
    %c0_i32_0 = arith.constant 0 : i32
    %c0_i32_1 = arith.constant 0 : i32
    return %arg0, %c0_i32, %arg1, %c0_i32_0 : i32, i32, i32, i32
  }
}

</mosaic_0001>

<llo_original>
// kernel: tpu_custom_call.1
$region0: #{tpu_custom_call.1}
  #allocation0 [shape = 'u32[]', space=smem, size = 0x4, offset = 0x4, fixed_abs, tag = 'smem constant byte address 0x4 - core index']
  #allocation1 [shape = 'u32[144,128]{1,0:T(1,128)}', space=vmem, size = 0x12000, scoped, tag = 'internal scratch']
  %s0 = inlined_call_operand.hbm [shape: f32[2,3,8,512], index: 0, kind: input, shape index: {}]
  %s1 = inlined_call_operand.hbm [shape: f32[2,3,8,512], index: 1, kind: output, shape index: {}]
  %s2 = sld [smem:[#allocation0]]
  $region41: #{tpu_custom_call.1} parent=0
    _
  %s4 = ssub.s32 1, %s2
  %s5 = scalar_select 0, %s4, %s2
  $region1: #{tpu_custom_call.1} parent=0
    #allocation2 [shape = 'u8[98304]{0}', space=vmem, size = 0x18000, scoped, tag = 'input window, operand 0']
    #allocation3 [shape = 's32[2]{0}', space=sflag, size = 0x8, scoped, tag = 'scoped memory for tpu_custom_call.1']
    #allocation4 [shape = 's32[2]{0}', space=sflag, size = 0x8, scoped, tag = 'scoped memory for tpu_custom_call.1']
    #allocation5 [shape = 'u8[98304]{0}', space=vmem, size = 0x18000, scoped, tag = 'output window, operand 0']
    %6 = vsyncpa [#allocation3], 0
    %s7 = scalar_lea.sflag [#allocation3], 1
    %8 = vsyncpa %s7, 0
    %9 = vsyncpa [#allocation4], 0
    %s10 = scalar_lea.sflag [#allocation4], 1
    %11 = vsyncpa %s10, 0
    loop: start=0, step=1, limit=4
    $region2: #{tpu_custom_call.1} parent=1 // loop_pre_header
      _
    $region3: #{tpu_custom_call.1} parent=1 // loop_header
      %s13 = sphi 0, %s17
      %p14 = scmp.ge.s32.totalorder %s13, 4
      %s20 = sphi 0, %s32
      %s21 = sphi 0, %s28
      %s22 = sphi 0, %s20
      %s23 = sphi 0, %s21
      %s24 = sphi 0, %s22
      %s25 = sphi 0, %s23
      %s37 = sphi 0, %s39
      %s40 = sphi 0, %s37
      %s41 = sphi 0, %s40
      %s57 = sphi 0, %s41
      %s65 = sphi 0, %s67
      %s68 = sphi 0, %s65
      %s69 = sphi 0, %s68
      %s85 = sphi 0, %s69
    $region4: #{tpu_custom_call.1} parent=1 // loop_header_branch
      %16 = sbr.rel (%p14) target = $region8
    $region5: #{tpu_custom_call.1} parent=1 // loop_body
      %s18 = ssub.s32 %s13, 1
      %s19 = ssub.s32 %s13, 2
      %s26 = sadd.s32 1, %s21
      %p27 = scmp.ge.s32.totalorder %s26, 1
      %s28 = scalar_select %p27, 0, %s26
      %s29 = sadd.s32 1, %s20
      %s30 = scalar_select %p27, %s29, %s20
      %p31 = scmp.ge.s32.totalorder %s30, 2
      %s32 = scalar_select %p31, 0, %s30
      %s33 = ssub.s32 %s20, %s32
      %s34 = ssub.s32 %s21, %s28
      %s35 = sor.u32 %s33, %s34
      %p36 = scmp.eq.s32.totalorder %s35, 0
      %s38 = sadd.s32 %s37, 1
      %s39 = scalar_select %p36, %s37, %s38
      %p42 = pneg %p36
      %p43 = scmp.eq.s32.totalorder %s13, 1
      %p44 = por %p42, %p43
      %p45 = scmp.ne.s32.totalorder %s37, %s40
      %p46 = scmp.eq.s32.totalorder %s13, 0
      %p47 = por %p45, %p46
      %p48 = scmp.ne.s32.totalorder %s37, %s40
      %p49 = scmp.eq.s32.totalorder %s18, 1
      %p50 = por %p48, %p49
      %p51 = scmp.ne.s32.totalorder %s40, %s41
      %p52 = scmp.eq.s32.totalorder %s18, 0
      %p53 = por %p51, %p52
      %p54 = scmp.ne.s32.totalorder %s40, %s41
      %p55 = scmp.eq.s32.totalorder %s19, 1
      %p56 = por %p54, %p55
      %p58 = scmp.ne.s32.totalorder %s41, %s57
      %p59 = scmp.eq.s32.totalorder %s19, 0
      %p60 = por %p58, %p59
      %s61 = ssub.s32 %s20, %s32
      %s62 = ssub.s32 %s21, %s28
      %s63 = sor.u32 %s61, %s62
      %p64 = scmp.eq.s32.totalorder %s63, 0
      %s66 = sadd.s32 %s65, 1
      %s67 = scalar_select %p64, %s65, %s66
      %p70 = pneg %p64
      %p71 = scmp.eq.s32.totalorder %s13, 1
      %p72 = por %p70, %p71
      %p73 = scmp.ne.s32.totalorder %s65, %s68
      %p74 = scmp.eq.s32.totalorder %s13, 0
      %p75 = por %p73, %p74
      %p76 = scmp.ne.s32.totalorder %s65, %s68
      %p77 = scmp.eq.s32.totalorder %s18, 1
      %p78 = por %p76, %p77
      %p79 = scmp.ne.s32.totalorder %s68, %s69
      %p80 = scmp.eq.s32.totalorder %s18, 0
      %p81 = por %p79, %p80
      %p82 = scmp.ne.s32.totalorder %s68, %s69
      %p83 = scmp.eq.s32.totalorder %s19, 1
      %p84 = por %p82, %p83
      %p86 = scmp.ne.s32.totalorder %s69, %s85
      %p87 = scmp.eq.s32.totalorder %s19, 0
      %p88 = por %p86, %p87
      %p89 = scmp.le.s32.totalorder 1, %s13
      %p90 = scmp.lt.s32.totalorder %s13, 3
      %p91 = pnand %p89, %p90
      %p92 = pneg %p91
      // Predicated region
      $region9: #{tpu_custom_call.1} parent=5 // pred_check
        _
      $region10: #{tpu_custom_call.1} parent=5 // pred_check_branch
        %94 = sbr.rel (%p91) target = $region12
      $region11: #{tpu_custom_call.1} parent=5 // pred_region
        %s95 = ssub.s32 %s13, 1
      $region12: #{tpu_custom_call.1} parent=5 // pred_fallthru
        _
      %p96 = scmp.lt.s32.totalorder %s13, 2
      // Predicated region
      $region13: #{tpu_custom_call.1} parent=5 // pred_check
        %p97 = pneg %p96
      $region14: #{tpu_custom_call.1} parent=5 // pred_check_branch
        %99 = sbr.rel (%p97) target = $region16
      $region15: #{tpu_custom_call.1} parent=5 // pred_region
        // Predicated region
        $region17: #{tpu_custom_call.1} parent=15 // pred_check
          %p100 = pneg %p47
        $region18: #{tpu_custom_call.1} parent=15 // pred_check_branch
          %102 = sbr.rel (%p100) target = $region20
        $region19: #{tpu_custom_call.1} parent=15 // pred_region
          %s103 = sand.u32 %s37, 1
          %s104 = scalar_lea.sflag [#allocation3], %s103
          %s105 = sand.u32 %s37, 1
          %s106 = smul.addr %s105, 96
          %s107 = scalar_lea.vmem [#allocation2], %s106
          %s109 = ssub.s32 1536, 1536
          %110 = vsyncadd %s104, %s109
          %s111 = smul.addr %s21, 4
          %s112 = smul.addr %s20, 12
          %s113 = sadd.s32 %s111, %s112
          %s114 = smul.addr %s113, 128
          %s115 = scalar_lea.hbm %s0, %s114
          %s116 = sshll.u32 %s107, 4
          %s117 = int_to_ptr.vmem [resolvable:$true] %s116
          %122 = dma.hbm_to_vmem [thread:$0]  %s115, 1536, %s117, %s104, 512, 512, 32
        $region20: #{tpu_custom_call.1} parent=15 // pred_fallthru
          _
      $region16: #{tpu_custom_call.1} parent=5 // pred_fallthru
        _
      %p123 = scmp.le.s32.totalorder 1, %s13
      %p124 = scmp.lt.s32.totalorder %s13, 3
      %p125 = pnand %p123, %p124
      %p126 = pneg %p125
      // Predicated region
      $region21: #{tpu_custom_call.1} parent=5 // pred_check
        _
      $region22: #{tpu_custom_call.1} parent=5 // pred_check_branch
        %128 = sbr.rel (%p125) target = $region24
      $region23: #{tpu_custom_call.1} parent=5 // pred_region
        %s129 = ssub.s32 %s13, 1
        %s130 = sand.u32 %s40, 1
        %s131 = scalar_lea.sflag [#allocation3], %s130
        %s132 = sand.u32 %s40, 1
        %s133 = smul.addr %s132, 96
        %s134 = scalar_lea.vmem [#allocation2], %s133
        // Predicated region
        $region25: #{tpu_custom_call.1} parent=23 // pred_check
          %p135 = pneg %p53
        $region26: #{tpu_custom_call.1} parent=23 // pred_check_branch
          %137 = sbr.rel (%p135) target = $region28
        $region27: #{tpu_custom_call.1} parent=23 // pred_region
          %138 = dma.done %s131, 1536
        $region28: #{tpu_custom_call.1} parent=23 // pred_fallthru
          _
        %s139 = sand.u32 %s40, 1
        %s140 = scalar_lea.sflag [#allocation3], %s139
        %s141 = sand.u32 %s40, 1
        %s142 = smul.addr %s141, 96
        %s143 = scalar_lea.vmem [#allocation2], %s142
        %p144 = pneg %p53
        %p145 = pneg %p50
        %p146 = pneg %p81
        %p147 = pneg %p78
        %s148 = sand.u32 %s68, 1
        %s149 = scalar_lea.sflag [#allocation4], %s148
        %s150 = sand.u32 %s68, 1
        %s151 = smul.addr %s150, 96
        %s152 = scalar_lea.vmem [#allocation5], %s151
        %v153 = vld [vmem:[%s134] sm:$0xff]
        %v154 = vld [vmem:[%s134 + $0x8] sm:$0xff]
        %v155 = vld [vmem:[%s134 + $0x10] sm:$0xff]
        %v156 = vld [vmem:[%s134 + $0x18] sm:$0xff]
        %v157 = vmul.f32 %v153, 100.0
        %v158 = vmul.f32 %v154, 100.0
        %v159 = vmul.f32 %v155, 100.0
        %v160 = vmul.f32 %v156, 100.0
        %s161 = scalar_lea.vmem %s134, 32 [#allocation2]
        %v162 = vld [vmem:[%s161] sm:$0xff]
        %v163 = vld [vmem:[%s161 + $0x8] sm:$0xff]
        %v164 = vld [vmem:[%s161 + $0x10] sm:$0xff]
        %v165 = vld [vmem:[%s161 + $0x18] sm:$0xff]
        %v166 = vmul.f32 %v162, 2.0
        %v167 = vmul.f32 %v163, 2.0
        %v168 = vmul.f32 %v164, 2.0
        %v169 = vmul.f32 %v165, 2.0
        %v170 = vsub.f32 %v166, 1.0
        %v171 = vsub.f32 %v167, 1.0
        %v172 = vsub.f32 %v168, 1.0
        %v173 = vsub.f32 %v169, 1.0
        %v174 = vmul.f32 %v170, 110.0
        %v175 = vmul.f32 %v171, 110.0
        %v176 = vmul.f32 %v172, 110.0
        %v177 = vmul.f32 %v173, 110.0
        %s178 = scalar_lea.vmem %s134, 64 [#allocation2]
        %v179 = vld [vmem:[%s178] sm:$0xff]
        %v180 = vld [vmem:[%s178 + $0x8] sm:$0xff]
        %v181 = vld [vmem:[%s178 + $0x10] sm:$0xff]
        %v182 = vld [vmem:[%s178 + $0x18] sm:$0xff]
        %v183 = vmul.f32 %v179, 2.0
        %v184 = vmul.f32 %v180, 2.0
        %v185 = vmul.f32 %v181, 2.0
        %v186 = vmul.f32 %v182, 2.0
        %v187 = vsub.f32 %v183, 1.0
        %v188 = vsub.f32 %v184, 1.0
        %v189 = vsub.f32 %v185, 1.0
        %v190 = vsub.f32 %v186, 1.0
        %v191 = vmul.f32 %v187, 110.0
        %v192 = vmul.f32 %v188, 110.0
        %v193 = vmul.f32 %v189, 110.0
        %v194 = vmul.f32 %v190, 110.0
        %v195 = vadd.f32 %v157, 16.0
        %v196 = vadd.f32 %v158, 16.0
        %v197 = vadd.f32 %v159, 16.0
        %v198 = vadd.f32 %v160, 16.0
        %v199 = vmul.f32 %v195, 0.00862069
        %v200 = vmul.f32 %v196, 0.00862069
        %v201 = vmul.f32 %v197, 0.00862069
        %v202 = vmul.f32 %v198, 0.00862069
        %v203 = vmul.f32 %v174, 0.002
        %v204 = vmul.f32 %v175, 0.002
        %v205 = vmul.f32 %v176, 0.002
        %v206 = vmul.f32 %v177, 0.002
        %v207 = vadd.f32 %v199, %v203
        %v208 = vadd.f32 %v200, %v204
        %v209 = vadd.f32 %v201, %v205
        %v210 = vadd.f32 %v202, %v206
        %v211 = vmul.f32 %v191, 0.005
        %v212 = vmul.f32 %v192, 0.005
        %v213 = vmul.f32 %v193, 0.005
        %v214 = vmul.f32 %v194, 0.005
        %v215 = vsub.f32 %v199, %v211
        %v216 = vsub.f32 %v200, %v212
        %v217 = vsub.f32 %v201, %v213
        %v218 = vsub.f32 %v202, %v214
        %v219 = vsub.f32 %v207, 0.13793103
        %v220 = vsub.f32 %v208, 0.13793103
        %v221 = vsub.f32 %v209, 0.13793103
        %v222 = vsub.f32 %v210, 0.13793103
        %v223 = vmul.f32 %v219, 0.12841855
        %v224 = vmul.f32 %v220, 0.12841855
        %v225 = vmul.f32 %v221, 0.12841855
        %v226 = vmul.f32 %v222, 0.12841855
        %v227 = vmax.f32 %v207, 0.0001
        %v228 = vmax.f32 %v208, 0.0001
        %v229 = vmax.f32 %v209, 0.0001
        %v230 = vmax.f32 %v210, 0.0001
        %v231 = vmul.f32 %v227, %v227
        %v232 = vmul.f32 %v228, %v228
        %v233 = vmul.f32 %v229, %v229
        %v234 = vmul.f32 %v230, %v230
        %v235 = vmul.f32 %v231, %v227
        %v236 = vmul.f32 %v232, %v228
        %v237 = vmul.f32 %v233, %v229
        %v238 = vmul.f32 %v234, %v230
        %vm239 = vcmp.le.f32.partialorder %v207, 0.20689656
        %vm240 = vcmp.le.f32.partialorder %v208, 0.20689656
        %vm241 = vcmp.le.f32.partialorder %v209, 0.20689656
        %vm242 = vcmp.le.f32.partialorder %v210, 0.20689656
        %v243 = vsel %vm239, %v223, %v235
        %v244 = vsel %vm240, %v224, %v236
        %v245 = vsel %vm241, %v225, %v237
        %v246 = vsel %vm242, %v226, %v238
        %v247 = vsub.f32 %v199, 0.13793103
        %v248 = vsub.f32 %v200, 0.13793103
        %v249 = vsub.f32 %v201, 0.13793103
        %v250 = vsub.f32 %v202, 0.13793103
        %v251 = vmul.f32 %v247, 0.12841855
        %v252 = vmul.f32 %v248, 0.12841855
        %v253 = vmul.f32 %v249, 0.12841855
        %v254 = vmul.f32 %v250, 0.12841855
        %v255 = vmax.f32 %v199, 0.0001
        %v256 = vmax.f32 %v200, 0.0001
        %v257 = vmax.f32 %v201, 0.0001
        %v258 = vmax.f32 %v202, 0.0001
        %v259 = vmul.f32 %v255, %v255
        %v260 = vmul.f32 %v256, %v256
        %v261 = vmul.f32 %v257, %v257
        %v262 = vmul.f32 %v258, %v258
        %v263 = vmul.f32 %v259, %v255
        %v264 = vmul.f32 %v260, %v256
        %v265 = vmul.f32 %v261, %v257
        %v266 = vmul.f32 %v262, %v258
        %vm267 = vcmp.le.f32.partialorder %v199, 0.20689656
        %vm268 = vcmp.le.f32.partialorder %v200, 0.20689656
        %vm269 = vcmp.le.f32.partialorder %v201, 0.20689656
        %vm270 = vcmp.le.f32.partialorder %v202, 0.20689656
        %v271 = vsel %vm267, %v251, %v263
        %v272 = vsel %vm268, %v252, %v264
        %v273 = vsel %vm269, %v253, %v265
        %v274 = vsel %vm270, %v254, %v266
        %v275 = vsub.f32 %v215, 0.13793103
        %v276 = vsub.f32 %v216, 0.13793103
        %v277 = vsub.f32 %v217, 0.13793103
        %v278 = vsub.f32 %v218, 0.13793103
        %v279 = vmul.f32 %v275, 0.12841855
        %v280 = vmul.f32 %v276, 0.12841855
        %v281 = vmul.f32 %v277, 0.12841855
        %v282 = vmul.f32 %v278, 0.12841855
        %v283 = vmax.f32 %v215, 0.0001
        %v284 = vmax.f32 %v216, 0.0001
        %v285 = vmax.f32 %v217, 0.0001
        %v286 = vmax.f32 %v218, 0.0001
        %v287 = vmul.f32 %v283, %v283
        %v288 = vmul.f32 %v284, %v284
        %v289 = vmul.f32 %v285, %v285
        %v290 = vmul.f32 %v286, %v286
        %v291 = vmul.f32 %v287, %v283
        %v292 = vmul.f32 %v288, %v284
        %v293 = vmul.f32 %v289, %v285
        %v294 = vmul.f32 %v290, %v286
        %vm295 = vcmp.le.f32.partialorder %v215, 0.20689656
        %vm296 = vcmp.le.f32.partialorder %v216, 0.20689656
        %vm297 = vcmp.le.f32.partialorder %v217, 0.20689656
        %vm298 = vcmp.le.f32.partialorder %v218, 0.20689656
        %v299 = vsel %vm295, %v279, %v291
        %v300 = vsel %vm296, %v280, %v292
        %v301 = vsel %vm297, %v281, %v293
        %v302 = vsel %vm298, %v282, %v294
        %v303 = vmul.f32 %v243, 3.079909
        %v304 = vmul.f32 %v244, 3.079909
        %v305 = vmul.f32 %v245, 3.079909
        %v306 = vmul.f32 %v246, 3.079909
        %v307 = vmul.f32 %v271, -1.5371385
        %v308 = vmul.f32 %v272, -1.5371385
        %v309 = vmul.f32 %v273, -1.5371385
        %v310 = vmul.f32 %v274, -1.5371385
        %v311 = vadd.f32 %v303, %v307
        %v312 = vadd.f32 %v304, %v308
        %v313 = vadd.f32 %v305, %v309
        %v314 = vadd.f32 %v306, %v310
        %v315 = vmul.f32 %v299, -0.5427781
        %v316 = vmul.f32 %v300, -0.5427781
        %v317 = vmul.f32 %v301, -0.5427781
        %v318 = vmul.f32 %v302, -0.5427781
        %v319 = vadd.f32 %v311, %v315
        %v320 = vadd.f32 %v312, %v316
        %v321 = vadd.f32 %v313, %v317
        %v322 = vadd.f32 %v314, %v318
        %v323 = vmul.f32 %v243, -0.9212447
        %v324 = vmul.f32 %v244, -0.9212447
        %v325 = vmul.f32 %v245, -0.9212447
        %v326 = vmul.f32 %v246, -0.9212447
        %v327 = vmul.f32 %v271, 1.8760108
        %v328 = vmul.f32 %v272, 1.8760108
        %v329 = vmul.f32 %v273, 1.8760108
        %v330 = vmul.f32 %v274, 1.8760108
        %v331 = vadd.f32 %v323, %v327
        %v332 = vadd.f32 %v324, %v328
        %v333 = vadd.f32 %v325, %v329
        %v334 = vadd.f32 %v326, %v330
        %v335 = vmul.f32 %v299, 0.04524426
        %v336 = vmul.f32 %v300, 0.04524426
        %v337 = vmul.f32 %v301, 0.04524426
        %v338 = vmul.f32 %v302, 0.04524426
        %v339 = vadd.f32 %v331, %v335
        %v340 = vadd.f32 %v332, %v336
        %v341 = vadd.f32 %v333, %v337
        %v342 = vadd.f32 %v334, %v338
        %v343 = vmul.f32 %v243, 0.0528866
        %v344 = vmul.f32 %v244, 0.0528866
        %v345 = vmul.f32 %v245, 0.0528866
        %v346 = vmul.f32 %v246, 0.0528866
        %v347 = vmul.f32 %v271, -0.2040259
        %v348 = vmul.f32 %v272, -0.2040259
        %v349 = vmul.f32 %v273, -0.2040259
        %v350 = vmul.f32 %v274, -0.2040259
        %v351 = vadd.f32 %v343, %v347
        %v352 = vadd.f32 %v344, %v348
        %v353 = vadd.f32 %v345, %v349
        %v354 = vadd.f32 %v346, %v350
        %v355 = vmul.f32 %v299, 1.1510582
        %v356 = vmul.f32 %v300, 1.1510582
        %v357 = vmul.f32 %v301, 1.1510582
        %v358 = vmul.f32 %v302, 1.1510582
        %v359 = vadd.f32 %v351, %v355
        %v360 = vadd.f32 %v352, %v356
        %v361 = vadd.f32 %v353, %v357
        %v362 = vadd.f32 %v354, %v358
        %v363 = vmul.f32 %v319, 12.92
        %v364 = vmul.f32 %v320, 12.92
        %v365 = vmul.f32 %v321, 12.92
        %v366 = vmul.f32 %v322, 12.92
        %v367 = vmax.f32 %v319, 0.0001
        %v368 = vmax.f32 %v320, 0.0001
        %v369 = vmax.f32 %v321, 0.0001
        %v370 = vmax.f32 %v322, 0.0001
        %v371 = vpow.f32 %v367, 0.41666666
        %v372 = vpow.f32 %v368, 0.41666666
        %v373 = vpow.f32 %v369, 0.41666666
        %v374 = vpow.f32 %v370, 0.41666666
        %v375 = vmul.f32 %v371, 1.055
        %v376 = vmul.f32 %v372, 1.055
        %v377 = vmul.f32 %v373, 1.055
        %v378 = vmul.f32 %v374, 1.055
        %v379 = vsub.f32 %v375, 0.055
        %v380 = vsub.f32 %v376, 0.055
        %v381 = vsub.f32 %v377, 0.055
        %v382 = vsub.f32 %v378, 0.055
        %vm383 = vcmp.le.f32.partialorder %v319, 0.0031308
        %vm384 = vcmp.le.f32.partialorder %v320, 0.0031308
        %vm385 = vcmp.le.f32.partialorder %v321, 0.0031308
        %vm386 = vcmp.le.f32.partialorder %v322, 0.0031308
        %v387 = vsel %vm383, %v363, %v379
        %v388 = vsel %vm384, %v364, %v380
        %v389 = vsel %vm385, %v365, %v381
        %v390 = vsel %vm386, %v366, %v382
        %391 = vst [vmem:[%s152] sm:$0xff] %v387
        %392 = vst [vmem:[%s152 + $0x8] sm:$0xff] %v388
        %393 = vst [vmem:[%s152 + $0x10] sm:$0xff] %v389
        %394 = vst [vmem:[%s152 + $0x18] sm:$0xff] %v390
        %v395 = vmul.f32 %v339, 12.92
        %v396 = vmul.f32 %v340, 12.92
        %v397 = vmul.f32 %v341, 12.92
        %v398 = vmul.f32 %v342, 12.92
        %v399 = vmax.f32 %v339, 0.0001
        %v400 = vmax.f32 %v340, 0.0001
        %v401 = vmax.f32 %v341, 0.0001
        %v402 = vmax.f32 %v342, 0.0001
        %v403 = vpow.f32 %v399, 0.41666666
        %v404 = vpow.f32 %v400, 0.41666666
        %v405 = vpow.f32 %v401, 0.41666666
        %v406 = vpow.f32 %v402, 0.41666666
        %v407 = vmul.f32 %v403, 1.055
        %v408 = vmul.f32 %v404, 1.055
        %v409 = vmul.f32 %v405, 1.055
        %v410 = vmul.f32 %v406, 1.055
        %v411 = vsub.f32 %v407, 0.055
        %v412 = vsub.f32 %v408, 0.055
        %v413 = vsub.f32 %v409, 0.055
        %v414 = vsub.f32 %v410, 0.055
        %vm415 = vcmp.le.f32.partialorder %v339, 0.0031308
        %vm416 = vcmp.le.f32.partialorder %v340, 0.0031308
        %vm417 = vcmp.le.f32.partialorder %v341, 0.0031308
        %vm418 = vcmp.le.f32.partialorder %v342, 0.0031308
        %v419 = vsel %vm415, %v395, %v411
        %v420 = vsel %vm416, %v396, %v412
        %v421 = vsel %vm417, %v397, %v413
        %v422 = vsel %vm418, %v398, %v414
        %s423 = scalar_lea.vmem %s152, 32 [#allocation5]
        %424 = vst [vmem:[%s423] sm:$0xff] %v419
        %425 = vst [vmem:[%s423 + $0x8] sm:$0xff] %v420
        %426 = vst [vmem:[%s423 + $0x10] sm:$0xff] %v421
        %427 = vst [vmem:[%s423 + $0x18] sm:$0xff] %v422
        %v428 = vmul.f32 %v359, 12.92
        %v429 = vmul.f32 %v360, 12.92
        %v430 = vmul.f32 %v361, 12.92
        %v431 = vmul.f32 %v362, 12.92
        %v432 = vmax.f32 %v359, 0.0001
        %v433 = vmax.f32 %v360, 0.0001
        %v434 = vmax.f32 %v361, 0.0001
        %v435 = vmax.f32 %v362, 0.0001
        %v436 = vpow.f32 %v432, 0.41666666
        %v437 = vpow.f32 %v433, 0.41666666
        %v438 = vpow.f32 %v434, 0.41666666
        %v439 = vpow.f32 %v435, 0.41666666
        %v440 = vmul.f32 %v436, 1.055
        %v441 = vmul.f32 %v437, 1.055
        %v442 = vmul.f32 %v438, 1.055
        %v443 = vmul.f32 %v439, 1.055
        %v444 = vsub.f32 %v440, 0.055
        %v445 = vsub.f32 %v441, 0.055
        %v446 = vsub.f32 %v442, 0.055
        %v447 = vsub.f32 %v443, 0.055
        %vm448 = vcmp.le.f32.partialorder %v359, 0.0031308
        %vm449 = vcmp.le.f32.partialorder %v360, 0.0031308
        %vm450 = vcmp.le.f32.partialorder %v361, 0.0031308
        %vm451 = vcmp.le.f32.partialorder %v362, 0.0031308
        %v452 = vsel %vm448, %v428, %v444
        %v453 = vsel %vm449, %v429, %v445
        %v454 = vsel %vm450, %v430, %v446
        %v455 = vsel %vm451, %v431, %v447
        %s456 = scalar_lea.vmem %s152, 64 [#allocation5]
        %457 = vst [vmem:[%s456] sm:$0xff] %v452
        %458 = vst [vmem:[%s456 + $0x8] sm:$0xff] %v453
        %459 = vst [vmem:[%s456 + $0x10] sm:$0xff] %v454
        %460 = vst [vmem:[%s456 + $0x18] sm:$0xff] %v455
        %s461 = sand.u32 %s68, 1
        %s462 = scalar_lea.sflag [#allocation4], %s461
        %s463 = sand.u32 %s68, 1
        %s464 = smul.addr %s463, 96
        %s465 = scalar_lea.vmem [#allocation5], %s464
        // Predicated region
        $region29: #{tpu_custom_call.1} parent=23 // pred_check
          %p466 = pneg %p78
        $region30: #{tpu_custom_call.1} parent=23 // pred_check_branch
          %468 = sbr.rel (%p466) target = $region32
        $region31: #{tpu_custom_call.1} parent=23 // pred_region
          %s470 = ssub.s32 1536, 1536
          %471 = vsyncadd %s462, %s470
          %s472 = smul.addr %s23, 4
          %s473 = smul.addr %s22, 12
          %s474 = sadd.s32 %s472, %s473
          %s475 = smul.addr %s474, 128
          %s476 = scalar_lea.hbm %s1, %s475
          %s477 = sshll.u32 %s465, 4
          %s478 = int_to_ptr.vmem [resolvable:$true] %s477
          %483 = dma.vmem_to_hbm [thread:$0]  %s478, 1536, %s476, %s462, 512, 512, 32
        $region32: #{tpu_custom_call.1} parent=23 // pred_fallthru
          _
      $region24: #{tpu_custom_call.1} parent=5 // pred_fallthru
        _
      %p484 = scmp.le.s32.totalorder 2, %s13
      // Predicated region
      $region33: #{tpu_custom_call.1} parent=5 // pred_check
        %p485 = pneg %p484
      $region34: #{tpu_custom_call.1} parent=5 // pred_check_branch
        %487 = sbr.rel (%p485) target = $region36
      $region35: #{tpu_custom_call.1} parent=5 // pred_region
        %s488 = ssub.s32 %s13, 2
        // Predicated region
        $region37: #{tpu_custom_call.1} parent=35 // pred_check
          %p489 = pneg %p84
        $region38: #{tpu_custom_call.1} parent=35 // pred_check_branch
          %491 = sbr.rel (%p489) target = $region40
        $region39: #{tpu_custom_call.1} parent=35 // pred_region
          %s492 = sand.u32 %s69, 1
          %s493 = scalar_lea.sflag [#allocation4], %s492
          %s494 = sand.u32 %s69, 1
          %s495 = smul.addr %s494, 96
          %s496 = scalar_lea.vmem [#allocation5], %s495
          %497 = dma.done %s493, 1536
        $region40: #{tpu_custom_call.1} parent=35 // pred_fallthru
          _
      $region36: #{tpu_custom_call.1} parent=5 // pred_fallthru
        _
    $region6: #{tpu_custom_call.1} parent=1 // loop_footer
      %s17 = sadd.s32 1, %s13
    $region7: #{tpu_custom_call.1} parent=1 // loop_footer_branch
      %12 = sbr.rel target = $region3
    $region8: #{tpu_custom_call.1} parent=1 // loop_exit
      _
    %498 = vsyncpa [#allocation3], 1
    %s499 = scalar_lea.sflag [#allocation3], 1
    %500 = vsyncpa %s499, 1
    %501 = vsyncpa [#allocation4], 1
    %s502 = scalar_lea.sflag [#allocation4], 1
    %503 = vsyncpa %s502, 1

</llo_original>
